<compile_context>
chip_gen: v7x
topology: tpu7x:2x2x1
jax: 0.10.0
libtpu: 0.0.40
codegen_flags: <defaults>
</compile_context>

<pallas_src>
import functools
import math

import jax
import jax.numpy as jnp
from jax.experimental import pallas as pl
from jax.experimental.pallas import tpu as pltpu


def _round_up(x, m):
    return (x + m - 1) // m * m


def _gelu_new(x):
    # GPT-J / HF "gelu_new" (tanh approximation), computed in f32.
    c = math.sqrt(2.0 / math.pi)
    return 0.5 * x * (1.0 + jnp.tanh(c * (x + 0.044715 * x * x * x)))


def _gptj_mlp_kernel(x_ref, w1_ref, b1_ref, w2_ref, b2_ref, o_ref, acc_ref):
    # Grid: (token tiles i, intermediate tiles k). k is the reduction axis.
    # x_ref:  [tm, H]     w1_ref: [H, ti]   b1_ref: [1, ti]
    # w2_ref: [ti, H]     b2_ref: [1, H]    acc_ref: [tm, H] f32 scratch
    k = pl.program_id(1)

    # fc_in partial: x @ W1[:, k-tile] + b1[k-tile]   (MXU, f32 accumulate)
    h = jnp.dot(x_ref[...], w1_ref[...], preferred_element_type=jnp.float32)
    h = h + b1_ref[...].astype(jnp.float32)
    # gelu_new on VPU/EUP (tanh goes to the EUP slot), in f32.
    a = _gelu_new(h).astype(w2_ref.dtype)
    # fc_out partial: gelu(h_k) @ W2[k-tile, :], f32 result.
    partial = jnp.dot(a, w2_ref[...], preferred_element_type=jnp.float32)

    @pl.when(k == 0)
    def _first():
        # Assign (not accumulate) and fold the fc_out bias here: saves a full
        # (tm, H) f32 store (broadcast init) + load (the '+=') per token tile.
        acc_ref[...] = partial + b2_ref[...].astype(jnp.float32)

    @pl.when(k > 0)
    def _accumulate():
        acc_ref[...] += partial

    @pl.when(k == pl.num_programs(1) - 1)
    def _finalize():
        o_ref[...] = acc_ref[...].astype(o_ref.dtype)


def _tpu_vmem_capacity_bytes():
    try:
        info = pltpu.get_tpu_info()
        cap = getattr(info, "vmem_capacity_bytes", None)
        if cap:
            return int(cap)
    except Exception:
        pass
    # Conservative fallback: assume the smallest generation (v7x, 64 MiB/TC).
    return 64 * 1024 * 1024


def _num_tensorcores():
    try:
        return max(1, int(getattr(jax.devices()[0], "num_cores", 1)))
    except Exception:
        return 1


def _vmem_bytes(tm, ti, H, x_item, w_item, out_item):
    # Double-buffered pipelined blocks + resident f32 accumulator.
    dbl = 2
    return (dbl * tm * H * x_item          # x tile
            + dbl * H * ti * w_item        # W1 tile
            + dbl * 8 * ti * w_item        # b1 tile (sublane-padded)
            + dbl * ti * H * w_item        # W2 tile
            + dbl * 8 * H * w_item         # b2 tile
            + dbl * tm * H * out_item      # out tile
            + tm * H * 4)                  # f32 accumulator scratch


def _select_tiles(T, H, I, x_dtype, w_dtype, out_dtype, tm, ti, vmem_limit_bytes):
    x_item = jnp.dtype(x_dtype).itemsize
    w_item = jnp.dtype(w_dtype).itemsize
    o_item = jnp.dtype(out_dtype).itemsize
    min_row = {1: 32, 2: 16}.get(x_item, 8)   # dtype-aware sublane minimum

    cap = _tpu_vmem_capacity_bytes()
    big_vmem = cap >= 96 * 1024 * 1024        # v5e/v6e (128 MiB) vs v7x (64 MiB)
    if vmem_limit_bytes is None:
        # Leave ~15% headroom for compiler-internal scratch / semaphores.
        vmem_limit_bytes = int(cap * 0.85)
    if tm is None:
        tm = 1024 if big_vmem else 512        # AI ~ tm flops/byte on weight stream
    if ti is None:
        ti = 1024 if big_vmem else 512

    # Cap by the (rounded) problem size.
    tm = max(min_row, min(_round_up(tm, min_row), _round_up(T, min_row)))
    ti = max(128, min(_round_up(ti, 128), _round_up(I, 128)))

    # Megacore: make sure the "parallel" token axis has >= num_cores tiles.
    ncores = _num_tensorcores()
    Tr = _round_up(T, min_row)
    if ncores >= 2 and (Tr // tm) < ncores and Tr >= ncores * min_row:
        tm = max(min_row, _round_up((Tr + ncores - 1) // ncores, min_row))

    # Dtype-aware shrink until the double-buffered working set fits the budget.
    while _vmem_bytes(tm, ti, H, x_item, w_item, o_item) > vmem_limit_bytes:
        if ti >= tm and ti > 128:
            ti //= 2
        elif tm > min_row:
            tm = max(min_row, tm // 2)
        elif ti > 128:
            ti //= 2
        else:
            break

    # Prefer a ti that divides I exactly (avoids materializing padded copies of
    # both weight matrices in HBM every call). Real GPT-J I always divides.
    if I % ti != 0:
        for cand in range(ti - 128, 0, -128):
            if I % cand == 0:
                ti = cand
                break

    return tm, ti, vmem_limit_bytes


@functools.partial(jax.jit, static_argnames=("tm", "ti", "vmem_limit_bytes"))
def _gptj_mlp_call(x, w1, b1, w2, b2, *, tm, ti, vmem_limit_bytes):
    T, H = x.shape
    I = w1.shape[1]
    min_row = {1: 32, 2: 16}.get(x.dtype.itemsize, 8)

    tm_eff = max(min_row, min(tm, _round_up(T, min_row)))
    ti_eff = max(128, min(ti, _round_up(I, 128)))
    Tp = _round_up(T, tm_eff)
    Ip = _round_up(I, ti_eff)

    xp = x if Tp == T else jnp.pad(x, ((0, Tp - T), (0, 0)))
    if Ip != I:
        # Only reached when no 128-aligned tile divides I (toy shapes).
        # Zero padding is exact: gelu(x @ 0 + 0) = 0 contributes nothing.
        w1p = jnp.pad(w1, ((0, 0), (0, Ip - I)))
        b1p = jnp.pad(b1, ((0, Ip - I),))
        w2p = jnp.pad(w2, ((0, Ip - I), (0, 0)))
    else:
        w1p, b1p, w2p = w1, b1, w2
    b1_2d = b1p.reshape(1, Ip)
    b2_2d = b2.reshape(1, H)

    grid = (Tp // tm_eff, Ip // ti_eff)
    n_token_tiles = grid[0]

    cost = pl.CostEstimate(
        flops=4 * Tp * H * Ip,                       # two Tp x H x Ip matmuls
        transcendentals=Tp * Ip,                     # tanh in gelu_new
        bytes_accessed=int(
            Tp * H * x.dtype.itemsize                # x read
            + Tp * H * x.dtype.itemsize              # out write
            # weights/biases are re-streamed once per token tile:
            + n_token_tiles * (H * Ip * w1.dtype.itemsize
                               + Ip * H * w2.dtype.itemsize
                               + Ip * b1.dtype.itemsize
                               + H * b2.dtype.itemsize)))

    out = pl.pallas_call(
        _gptj_mlp_kernel,
        out_shape=jax.ShapeDtypeStruct((Tp, H), x.dtype),
        grid_spec=pltpu.PrefetchScalarGridSpec(
            num_scalar_prefetch=0,
            grid=grid,
            in_specs=[
                pl.BlockSpec((tm_eff, H), lambda i, k: (i, 0)),   # x tile (const over k)
                pl.BlockSpec((H, ti_eff), lambda i, k: (0, k)),   # fc_in weight tile
                pl.BlockSpec((1, ti_eff), lambda i, k: (0, k)),   # fc_in bias tile
                pl.BlockSpec((ti_eff, H), lambda i, k: (k, 0)),   # fc_out weight tile
                pl.BlockSpec((1, H), lambda i, k: (0, 0)),        # fc_out bias
            ],
            out_specs=pl.BlockSpec((tm_eff, H), lambda i, k: (i, 0)),
            scratch_shapes=[pltpu.VMEM((tm_eff, H), jnp.float32)],
        ),
        compiler_params=pltpu.CompilerParams(
            dimension_semantics=("parallel", "arbitrary"),
            vmem_limit_bytes=vmem_limit_bytes,
        ),
        cost_estimate=cost,
    )(xp, w1p, b1_2d, w2p, b2_2d)

    return out[:T] if Tp != T else out


def gptj_mlp(x, w1, b1, w2, b2, *, tm=None, ti=None, vmem_limit_bytes=None):
    """x: [T, H], w1: [H, I], b1: [I], w2: [I, H], b2: [H] -> [T, H]."""
    T, H = x.shape
    Hw, I = w1.shape
    assert Hw == H and w2.shape == (I, H) and b1.shape == (I,) and b2.shape == (H,)
    tm_s, ti_s, vmem_s = _select_tiles(
        T, H, I, x.dtype, w1.dtype, x.dtype, tm, ti, vmem_limit_bytes)
    return _gptj_mlp_call(x, w1, b1, w2, b2,
                          tm=tm_s, ti=ti_s, vmem_limit_bytes=vmem_s)


def gptj_mlp_ref(x, w1, b1, w2, b2):
    h = x.astype(jnp.float32) @ w1.astype(jnp.float32) + b1.astype(jnp.float32)
    a = _gelu_new(h)
    return (a @ w2.astype(jnp.float32) + b2.astype(jnp.float32)).astype(x.dtype)


if __name__ == "__main__":
    key = jax.random.PRNGKey(0)

    # Test 1: small GPT-J-like shapes (n_embd=32, intermediate=128, seq=8),
    # auto tile selection (collapses to a single grid step on each axis).
    T, H, I = 8, 32, 128
    kx, kw1, kb1, kw2, kb2, k2, k3 = jax.random.split(key, 7)
    x = jax.random.normal(kx, (T, H), dtype=jnp.float32)
    w1 = jax.random.normal(kw1, (H, I), dtype=jnp.float32) * 0.02
    b1 = jax.random.normal(kb1, (I,), dtype=jnp.float32) * 0.02
    w2 = jax.random.normal(kw2, (I, H), dtype=jnp.float32) * 0.02
    b2 = jax.random.normal(kb2, (H,), dtype=jnp.float32) * 0.02

    out = jax.block_until_ready(gptj_mlp(x, w1, b1, w2, b2))
    ref = gptj_mlp_ref(x, w1, b1, w2, b2)
    assert out.shape == (T, H)
    assert jnp.allclose(out, ref, atol=1e-4, rtol=1e-4)

    # Test 2: multi-tile path (token padding + I-reduction grid) with explicit
    # tiles: T=10 (padded to 16), I=200 (padded to 256), tm=8, ti=128 -> (2, 2).
    T2, H2, I2 = 10, 32, 200
    ka, kb, kc, kd, ke = jax.random.split(k2, 5)
    x2 = jax.random.normal(ka, (T2, H2), dtype=jnp.float32)
    w12 = jax.random.normal(kb, (H2, I2), dtype=jnp.float32) * 0.02
    b12 = jax.random.normal(kc, (I2,), dtype=jnp.float32) * 0.02
    w22 = jax.random.normal(kd, (I2, H2), dtype=jnp.float32) * 0.02
    b22 = jax.random.normal(ke, (H2,), dtype=jnp.float32) * 0.02

    out2 = jax.block_until_ready(gptj_mlp(x2, w12, b12, w22, b22, tm=8, ti=128))
    ref2 = gptj_mlp_ref(x2, w12, b12, w22, b22)
    assert out2.shape == (T2, H2)
    assert jnp.allclose(out2, ref2, atol=1e-4, rtol=1e-4)

    # Test 3: bf16 path (dtype-aware sublane rounding to 16, f32 accumulation).
    T3, H3, I3 = 24, 128, 256
    kf, kg, kh, ki, kj = jax.random.split(k3, 5)
    x3 = jax.random.normal(kf, (T3, H3), dtype=jnp.float32).astype(jnp.bfloat16)
    w13 = (jax.random.normal(kg, (H3, I3), dtype=jnp.float32) * 0.02).astype(jnp.bfloat16)
    b13 = (jax.random.normal(kh, (I3,), dtype=jnp.float32) * 0.02).astype(jnp.bfloat16)
    w23 = (jax.random.normal(ki, (I3, H3), dtype=jnp.float32) * 0.02).astype(jnp.bfloat16)
    b23 = (jax.random.normal(kj, (H3,), dtype=jnp.float32) * 0.02).astype(jnp.bfloat16)

    out3 = jax.block_until_ready(gptj_mlp(x3, w13, b13, w23, b23))
    ref3 = gptj_mlp_ref(x3, w13, b13, w23, b23)
    assert out3.shape == (T3, H3)
    assert jnp.allclose(out3.astype(jnp.float32), ref3.astype(jnp.float32),
                        atol=2e-2, rtol=2e-2)

    print("KERNEL_OK")
</pallas_src>

<mosaic_0001>
module attributes {stable_mosaic.version = 11 : i64} {
  func.func @_gptj_mlp_kernel(%arg0: i32, %arg1: i32, %arg2: memref<8x32xf32, #tpu.memory_space<vmem>>, %arg3: memref<32x128xf32, #tpu.memory_space<vmem>>, %arg4: memref<1x128xf32, #tpu.memory_space<vmem>>, %arg5: memref<128x32xf32, #tpu.memory_space<vmem>>, %arg6: memref<1x32xf32, #tpu.memory_space<vmem>>, %arg7: memref<8x32xf32, #tpu.memory_space<vmem>>, %arg8: memref<8x32xf32, #tpu.memory_space<vmem>>) attributes {dimension_semantics = [#tpu.dimension_semantics<parallel>, #tpu.dimension_semantics<arbitrary>], iteration_bounds = array<i64: 1, 1>, scalar_prefetch = 0 : i64, scratch_operands = 1 : i64, tpu.core_type = #tpu.core_type<tc>, window_params = [{transform_indices = @transform_0, window_bounds = array<i64: 8, 32>}, {transform_indices = @transform_1, window_bounds = array<i64: 32, 128>}, {transform_indices = @transform_2, window_bounds = array<i64: 1, 128>}, {transform_indices = @transform_3, window_bounds = array<i64: 128, 32>}, {pipeline_mode = #tpu.pipeline_mode<synchronous>, transform_indices = @transform_4, window_bounds = array<i64: 1, 32>}, {transform_indices = @transform_5, window_bounds = array<i64: 8, 32>}]} {
    %c0 = arith.constant 0 : index
    %c0_0 = arith.constant 0 : index
    %0 = vector.load %arg2[%c0, %c0_0] : memref<8x32xf32, #tpu.memory_space<vmem>>, vector<8x32xf32>
    %c0_1 = arith.constant 0 : index
    %c0_2 = arith.constant 0 : index
    %1 = vector.load %arg3[%c0_1, %c0_2] : memref<32x128xf32, #tpu.memory_space<vmem>>, vector<32x128xf32>
    %cst = arith.constant dense<0.000000e+00> : vector<8x128xf32>
    %2 = tpu.matmul %0, %1, %cst {dimension_numbers = #tpu.dot_dimension_numbers<[1], [0], [0], [1], [0, 0, 1, 1], [], []>} : vector<8x32xf32>, vector<32x128xf32>, vector<8x128xf32> -> vector<8x128xf32>
    %c0_3 = arith.constant 0 : index
    %c0_4 = arith.constant 0 : index
    %3 = vector.load %arg4[%c0_3, %c0_4] : memref<1x128xf32, #tpu.memory_space<vmem>>, vector<1x128xf32>
    %4 = vector.broadcast %3 : vector<1x128xf32> to vector<8x128xf32>
    %5 = arith.addf %2, %4 : vector<8x128xf32>
    %cst_5 = arith.constant 5.000000e-01 : f32
    %6 = vector.broadcast %cst_5 : f32 to vector<8x128xf32>
    %7 = arith.mulf %6, %5 : vector<8x128xf32>
    %cst_6 = arith.constant 4.471500e-02 : f32
    %8 = vector.broadcast %cst_6 : f32 to vector<8x128xf32>
    %9 = arith.mulf %8, %5 : vector<8x128xf32>
    %10 = arith.mulf %9, %5 : vector<8x128xf32>
    %11 = arith.mulf %10, %5 : vector<8x128xf32>
    %12 = arith.addf %5, %11 : vector<8x128xf32>
    %cst_7 = arith.constant 0.797884583 : f32
    %13 = vector.broadcast %cst_7 : f32 to vector<8x128xf32>
    %14 = arith.mulf %13, %12 : vector<8x128xf32>
    %15 = math.tanh %14 : vector<8x128xf32>
    %cst_8 = arith.constant 1.000000e+00 : f32
    %16 = vector.broadcast %cst_8 : f32 to vector<8x128xf32>
    %17 = arith.addf %16, %15 : vector<8x128xf32>
    %18 = arith.mulf %7, %17 : vector<8x128xf32>
    %c0_9 = arith.constant 0 : index
    %c0_10 = arith.constant 0 : index
    %19 = vector.load %arg5[%c0_9, %c0_10] : memref<128x32xf32, #tpu.memory_space<vmem>>, vector<128x32xf32>
    %cst_11 = arith.constant dense<0.000000e+00> : vector<8x32xf32>
    %20 = tpu.matmul %18, %19, %cst_11 {dimension_numbers = #tpu.dot_dimension_numbers<[1], [0], [0], [1], [0, 0, 1, 1], [], []>} : vector<8x128xf32>, vector<128x32xf32>, vector<8x32xf32> -> vector<8x32xf32>
    %c0_i32 = arith.constant 0 : i32
    %21 = arith.cmpi eq, %arg1, %c0_i32 : i32
    %22 = arith.extui %21 : i1 to i32
    %c0_i32_12 = arith.constant 0 : i32
    %23 = arith.cmpi ne, %22, %c0_i32_12 : i32
    scf.if %23 {
      %c0_17 = arith.constant 0 : index
      %c0_18 = arith.constant 0 : index
      %30 = vector.load %arg6[%c0_17, %c0_18] : memref<1x32xf32, #tpu.memory_space<vmem>>, vector<1x32xf32>
      %31 = vector.broadcast %30 : vector<1x32xf32> to vector<8x32xf32>
      %32 = arith.addf %20, %31 : vector<8x32xf32>
      %c0_19 = arith.constant 0 : index
      %c0_20 = arith.constant 0 : index
      %33 = vector.load %arg8[%c0_19, %c0_20] : memref<8x32xf32, #tpu.memory_space<vmem>>, vector<8x32xf32>
      tpu.vector_store %arg8[%c0_19, %c0_20], %32 {strides = array<i32>} : memref<8x32xf32, #tpu.memory_space<vmem>>, vector<8x32xf32>,
    } else {
    }
    %c0_i32_13 = arith.constant 0 : i32
    %24 = arith.cmpi sgt, %arg1, %c0_i32_13 : i32
    %25 = arith.extui %24 : i1 to i32
    %c0_i32_14 = arith.constant 0 : i32
    %26 = arith.cmpi ne, %25, %c0_i32_14 : i32
    scf.if %26 {
      %c0_17 = arith.constant 0 : index
      %c0_18 = arith.constant 0 : index
      %30 = vector.load %arg8[%c0_17, %c0_18] : memref<8x32xf32, #tpu.memory_space<vmem>>, vector<8x32xf32>
      %31 = arith.addf %30, %20 : vector<8x32xf32>
      %c0_19 = arith.constant 0 : index
      %c0_20 = arith.constant 0 : index
      %32 = vector.load %arg8[%c0_19, %c0_20] : memref<8x32xf32, #tpu.memory_space<vmem>>, vector<8x32xf32>
      tpu.vector_store %arg8[%c0_19, %c0_20], %31 {strides = array<i32>} : memref<8x32xf32, #tpu.memory_space<vmem>>, vector<8x32xf32>,
    } else {
    }
    %c0_i32_15 = arith.constant 0 : i32
    %27 = arith.cmpi eq, %arg1, %c0_i32_15 : i32
    %28 = arith.extui %27 : i1 to i32
    %c0_i32_16 = arith.constant 0 : i32
    %29 = arith.cmpi ne, %28, %c0_i32_16 : i32
    scf.if %29 {
      %c0_17 = arith.constant 0 : index
      %c0_18 = arith.constant 0 : index
      %30 = vector.load %arg8[%c0_17, %c0_18] : memref<8x32xf32, #tpu.memory_space<vmem>>, vector<8x32xf32>
      %c0_19 = arith.constant 0 : index
      %c0_20 = arith.constant 0 : index
      %31 = vector.load %arg7[%c0_19, %c0_20] : memref<8x32xf32, #tpu.memory_space<vmem>>, vector<8x32xf32>
      tpu.vector_store %arg7[%c0_19, %c0_20], %30 {strides = array<i32>} : memref<8x32xf32, #tpu.memory_space<vmem>>, vector<8x32xf32>,
    } else {
    }
    return
  }
  func.func @transform_0(%arg0: i32, %arg1: i32) -> (i32, i32) {
    %c0_i32 = arith.constant 0 : i32
    %c0_i32_0 = arith.constant 0 : i32
    return %arg0, %c0_i32 : i32, i32
  }
  func.func @transform_1(%arg0: i32, %arg1: i32) -> (i32, i32) {
    %c0_i32 = arith.constant 0 : i32
    %c0_i32_0 = arith.constant 0 : i32
    return %c0_i32, %arg1 : i32, i32
  }
  func.func @transform_2(%arg0: i32, %arg1: i32) -> (i32, i32) {
    %c0_i32 = arith.constant 0 : i32
    %c0_i32_0 = arith.constant 0 : i32
    return %c0_i32, %arg1 : i32, i32
  }
  func.func @transform_3(%arg0: i32, %arg1: i32) -> (i32, i32) {
    %c0_i32 = arith.constant 0 : i32
    %c0_i32_0 = arith.constant 0 : i32
    return %arg1, %c0_i32 : i32, i32
  }
  func.func @transform_4(%arg0: i32, %arg1: i32) -> (i32, i32) {
    %c0_i32 = arith.constant 0 : i32
    %c0_i32_0 = arith.constant 0 : i32
    %c0_i32_1 = arith.constant 0 : i32
    return %c0_i32, %c0_i32_0 : i32, i32
  }
  func.func @transform_5(%arg0: i32, %arg1: i32) -> (i32, i32) {
    %c0_i32 = arith.constant 0 : i32
    %c0_i32_0 = arith.constant 0 : i32
    return %arg0, %c0_i32 : i32, i32
  }
}

</mosaic_0001>

<llo_original>
// kernel: _gptj_mlp_call.1
$region0: #{_gptj_mlp_call.1}
  #allocation0 [shape = 'u32[]', space=smem, size = 0x4, offset = 0x4, fixed_abs, tag = 'smem constant byte address 0x4 - core index']
  #allocation1 [shape = 'u32[144,128]{1,0:T(1,128)}', space=vmem, size = 0x12000, scoped, tag = 'internal scratch']
  #allocation2 [shape = 'f32[8,32]{1,0:T(8,128)}', space=vmem, size = 0x1000, scoped, tag = 'scratch operand']
  %s0 = inlined_call_operand.vmem [shape: f32[8,32], index: 0, kind: input, shape index: {}]
  %s1 = inlined_call_operand.vmem [shape: f32[32,128], index: 1, kind: input, shape index: {}]
  %s2 = inlined_call_operand.vmem [shape: f32[1,128], index: 2, kind: input, shape index: {}]
  %s3 = inlined_call_operand.vmem [shape: f32[128,32], index: 3, kind: input, shape index: {}]
  %s4 = inlined_call_operand.vmem [shape: f32[1,32], index: 4, kind: input, shape index: {}]
  %s5 = inlined_call_operand.hbm [shape: f32[8,32], index: 5, kind: output, shape index: {}]
  %s6 = sld [smem:[#allocation0]]
  $region42: #{_gptj_mlp_call.1} parent=0
    _
  %s8 = ssub.s32 1, %s6
  %s9 = scalar_select 0, %s8, %s6
  $region1: #{_gptj_mlp_call.1} parent=0
    #allocation3 [shape = 'u8[4096]{0}', space=vmem, size = 0x1000, scoped, tag = 'output window, operand 0, single buffered']
    #allocation4 [shape = 's32[1]{0}', space=sflag, size = 0x4, scoped, tag = 'scoped memory for _gptj_mlp_call.1']
    %10 = vsyncpa [#allocation4], 0
    // Predicated region
    $region2: #{_gptj_mlp_call.1} parent=1 // pred_check
      _
    $region3: #{_gptj_mlp_call.1} parent=1 // pred_check_branch
      %12 = sbr.rel (0) target = $region5
    $region4: #{_gptj_mlp_call.1} parent=1 // pred_region
      _
    $region5: #{_gptj_mlp_call.1} parent=1 // pred_fallthru
      _
    // Predicated region
    $region6: #{_gptj_mlp_call.1} parent=1 // pred_check
      _
    $region7: #{_gptj_mlp_call.1} parent=1 // pred_check_branch
      %14 = sbr.rel (0) target = $region9
    $region8: #{_gptj_mlp_call.1} parent=1 // pred_region
      _
    $region9: #{_gptj_mlp_call.1} parent=1 // pred_fallthru
      _
    // Predicated region
    $region10: #{_gptj_mlp_call.1} parent=1 // pred_check
      _
    $region11: #{_gptj_mlp_call.1} parent=1 // pred_check_branch
      %16 = sbr.rel (0) target = $region13
    $region12: #{_gptj_mlp_call.1} parent=1 // pred_region
      _
    $region13: #{_gptj_mlp_call.1} parent=1 // pred_fallthru
      _
    // Predicated region
    $region14: #{_gptj_mlp_call.1} parent=1 // pred_check
      _
    $region15: #{_gptj_mlp_call.1} parent=1 // pred_check_branch
      %18 = sbr.rel (0) target = $region17
    $region16: #{_gptj_mlp_call.1} parent=1 // pred_region
      _
    $region17: #{_gptj_mlp_call.1} parent=1 // pred_fallthru
      _
    // Predicated region
    $region18: #{_gptj_mlp_call.1} parent=1 // pred_check
      _
    $region19: #{_gptj_mlp_call.1} parent=1 // pred_check_branch
      %20 = sbr.rel (0) target = $region21
    $region20: #{_gptj_mlp_call.1} parent=1 // pred_region
      _
    $region21: #{_gptj_mlp_call.1} parent=1 // pred_fallthru
      _
    %v21 = vld [vmem:[%s0] sm:$0xff]
    %v22 = vld [vmem:[%s1] sm:$0xff]
    %v23 = vld [vmem:[%s1 + $0x8] sm:$0xff]
    %v24 = vld [vmem:[%s1 + $0x10] sm:$0xff]
    %v25 = vld [vmem:[%s1 + $0x18] sm:$0xff]
    %v26 = vld [vmem:[%s2] sm:$0x1]
    %v28 = vlaneseq
    %v29 = vshrl.u32 %v28, 7
    %v30 = vsub.s32 0, %v29
    %v31 = vrot.slane %v26, %v30
    %vm33 = vcmask 261120
    %v35 = vsel %vm33, %v21, 0
    %37 = vmatprep.subr.mxu0 0.0
    %38 = vmatpush1.msra.mxu0 %v22
    %39 = vmatprep.subr.mxu0 0.0
    %40 = vmatpush1.msra.mxu0 %v23
    %41 = vmatprep.subr.mxu0 0.0
    %42 = vmatpush1.msra.mxu0 %v24
    %43 = vmatprep.subr.mxu0 0.0
    %44 = vmatpush1.msra.mxu0 %v25
    %45 = vmatprep.subr.mxu0 0.0
    %46 = vmatpush1.msra.mxu0 0.0
    %47 = vmatprep.subr.mxu0 0.0
    %48 = vmatpush1.msra.mxu0 0.0
    %49 = vmatprep.subr.mxu0 0.0
    %50 = vmatpush1.msra.mxu0 0.0
    %51 = vmatprep.subr.mxu0 0.0
    %52 = vmatpush1.msra.mxu0 0.0
    %53 = vmatprep.subr.mxu0 0.0
    %54 = vmatpush1.msra.mxu0 0.0
    %55 = vmatprep.subr.mxu0 0.0
    %56 = vmatpush1.msra.mxu0 0.0
    %57 = vmatprep.subr.mxu0 0.0
    %58 = vmatpush1.msra.mxu0 0.0
    %59 = vmatprep.subr.mxu0 0.0
    %60 = vmatpush1.msra.mxu0 0.0
    %61 = vmatprep.subr.mxu0 0.0
    %62 = vmatpush1.msra.mxu0 0.0
    %63 = vmatprep.subr.mxu0 0.0
    %64 = vmatpush1.msra.mxu0 0.0
    %65 = vmatprep.subr.mxu0 0.0
    %66 = vmatpush1.msra.mxu0 0.0
    %67 = vmatprep.subr.mxu0 0.0
    %68 = vmatpush1.msra.mxu0 0.0
    %69 = vmatprep.subr.mxu0 0.0
    %70 = vmatpush1.msra.mxu0 0.0
    %71 = vmatprep.subr.mxu0 0.0
    %72 = vmatpush1.msra.mxu0 0.0
    %73 = vmatprep.subr.mxu0 0.0
    %74 = vmatpush1.msra.mxu0 0.0
    %75 = vmatprep.subr.mxu0 0.0
    %76 = vmatpush1.msra.mxu0 0.0
    %77 = vmatprep.subr.mxu0 0.0
    %78 = vmatpush1.msra.mxu0 0.0
    %79 = vmatprep.subr.mxu0 0.0
    %80 = vmatpush1.msra.mxu0 0.0
    %81 = vmatprep.subr.mxu0 0.0
    %82 = vmatpush1.msra.mxu0 0.0
    %83 = vmatprep.subr.mxu0 0.0
    %84 = vmatpush1.msra.mxu0 0.0
    %85 = vmatprep.subr.mxu0 0.0
    %86 = vmatpush1.msra.mxu0 0.0
    %87 = vmatprep.subr.mxu0 0.0
    %88 = vmatpush1.msra.mxu0 0.0
    %89 = vmatprep.subr.mxu0 0.0
    %90 = vmatpush1.msra.mxu0 0.0
    %91 = vmatprep.subr.mxu0 0.0
    %92 = vmatpush1.msra.mxu0 0.0
    %93 = vmatprep.subr.mxu0 0.0
    %94 = vmatpush1.msra.mxu0 0.0
    %95 = vmatprep.subr.mxu0 0.0
    %96 = vmatpush1.msra.mxu0 0.0
    %97 = vmatprep.subr.mxu0 0.0
    %98 = vmatpush1.msra.mxu0 0.0
    %99 = vmatprep.subr.mxu0 0.0
    %100 = vmatpush1.msra.mxu0 0.0
    %101 = vmatprep.mubr.f32.mxu0 0.0
    %102 = vmatmul.mubr.f32.gmra.mrb[0].mxu0 %v35
    %v103 = vpop.f32.mrb[0].mxu0
    %v104 = vadd.f32 %v31, %v103
    %v105 = vpop.f32.mrb[0].mxu0
    %106 = vdwg.mxu0
    %v107 = vmul.f32 %v104, 0.5
    %v108 = vmul.f32 %v104, 0.044715
    %v109 = vmul.f32 %v108, %v104
    %v110 = vmul.f32 %v109, %v104
    %v111 = vadd.f32 %v104, %v110
    %v112 = vmul.f32 %v111, 0.7978846
    %v113 = vtanh.pop %v112
    %v114 = vadd.f32 %v113, 1.0
    %v115 = vmul.f32 %v107, %v114
    %v116 = vld [vmem:[%s3] sm:$0xff]
    %v117 = vld [vmem:[%s3 + $0x8] sm:$0xff]
    %v118 = vld [vmem:[%s3 + $0x10] sm:$0xff]
    %v119 = vld [vmem:[%s3 + $0x18] sm:$0xff]
    %v120 = vld [vmem:[%s3 + $0x20] sm:$0xff]
    %v121 = vld [vmem:[%s3 + $0x28] sm:$0xff]
    %v122 = vld [vmem:[%s3 + $0x30] sm:$0xff]
    %v123 = vld [vmem:[%s3 + $0x38] sm:$0xff]
    %v124 = vld [vmem:[%s3 + $0x40] sm:$0xff]
    %v125 = vld [vmem:[%s3 + $0x48] sm:$0xff]
    %v126 = vld [vmem:[%s3 + $0x50] sm:$0xff]
    %v127 = vld [vmem:[%s3 + $0x58] sm:$0xff]
    %v128 = vld [vmem:[%s3 + $0x60] sm:$0xff]
    %v129 = vld [vmem:[%s3 + $0x68] sm:$0xff]
    %v130 = vld [vmem:[%s3 + $0x70] sm:$0xff]
    %v131 = vld [vmem:[%s3 + $0x78] sm:$0xff]
    %132 = vmatprep.subr.mxu0 0.0
    %133 = vmatpush1.msra.mxu0 %v116
    %134 = vmatprep.subr.mxu0 0.0
    %135 = vmatpush1.msra.mxu0 %v117
    %136 = vmatprep.subr.mxu0 0.0
    %137 = vmatpush1.msra.mxu0 %v118
    %138 = vmatprep.subr.mxu0 0.0
    %139 = vmatpush1.msra.mxu0 %v119
    %140 = vmatprep.subr.mxu0 0.0
    %141 = vmatpush1.msra.mxu0 %v120
    %142 = vmatprep.subr.mxu0 0.0
    %143 = vmatpush1.msra.mxu0 %v121
    %144 = vmatprep.subr.mxu0 0.0
    %145 = vmatpush1.msra.mxu0 %v122
    %146 = vmatprep.subr.mxu0 0.0
    %147 = vmatpush1.msra.mxu0 %v123
    %148 = vmatprep.subr.mxu0 0.0
    %149 = vmatpush1.msra.mxu0 %v124
    %150 = vmatprep.subr.mxu0 0.0
    %151 = vmatpush1.msra.mxu0 %v125
    %152 = vmatprep.subr.mxu0 0.0
    %153 = vmatpush1.msra.mxu0 %v126
    %154 = vmatprep.subr.mxu0 0.0
    %155 = vmatpush1.msra.mxu0 %v127
    %156 = vmatprep.subr.mxu0 0.0
    %157 = vmatpush1.msra.mxu0 %v128
    %158 = vmatprep.subr.mxu0 0.0
    %159 = vmatpush1.msra.mxu0 %v129
    %160 = vmatprep.subr.mxu0 0.0
    %161 = vmatpush1.msra.mxu0 %v130
    %162 = vmatprep.subr.mxu0 0.0
    %163 = vmatpush1.msra.mxu0 %v131
    %164 = vmatprep.subr.mxu0 0.0
    %165 = vmatpush1.msra.mxu0 0.0
    %166 = vmatprep.subr.mxu0 0.0
    %167 = vmatpush1.msra.mxu0 0.0
    %168 = vmatprep.subr.mxu0 0.0
    %169 = vmatpush1.msra.mxu0 0.0
    %170 = vmatprep.subr.mxu0 0.0
    %171 = vmatpush1.msra.mxu0 0.0
    %172 = vmatprep.subr.mxu0 0.0
    %173 = vmatpush1.msra.mxu0 0.0
    %174 = vmatprep.subr.mxu0 0.0
    %175 = vmatpush1.msra.mxu0 0.0
    %176 = vmatprep.subr.mxu0 0.0
    %177 = vmatpush1.msra.mxu0 0.0
    %178 = vmatprep.subr.mxu0 0.0
    %179 = vmatpush1.msra.mxu0 0.0
    %180 = vmatprep.subr.mxu0 0.0
    %181 = vmatpush1.msra.mxu0 0.0
    %182 = vmatprep.subr.mxu0 0.0
    %183 = vmatpush1.msra.mxu0 0.0
    %184 = vmatprep.subr.mxu0 0.0
    %185 = vmatpush1.msra.mxu0 0.0
    %186 = vmatprep.subr.mxu0 0.0
    %187 = vmatpush1.msra.mxu0 0.0
    %188 = vmatprep.subr.mxu0 0.0
    %189 = vmatpush1.msra.mxu0 0.0
    %190 = vmatprep.subr.mxu0 0.0
    %191 = vmatpush1.msra.mxu0 0.0
    %192 = vmatprep.subr.mxu0 0.0
    %193 = vmatpush1.msra.mxu0 0.0
    %194 = vmatprep.subr.mxu0 0.0
    %195 = vmatpush1.msra.mxu0 0.0
    %196 = vmatprep.mubr.f32.mxu0 0.0
    %197 = vmatmul.mubr.f32.gmra.mrb[0].mxu0 %v115
    %v198 = vpop.f32.mrb[0].mxu0
    %v199 = vadd.f32 0.0, %v198
    %v200 = vpop.f32.mrb[0].mxu0
    %201 = vdwg.mxu0
    %p202 = scmp.eq.s32.totalorder 0, 0
    // Predicated region
    $region22: #{_gptj_mlp_call.1} parent=1 // pred_check
      %p203 = pneg %p202
    $region23: #{_gptj_mlp_call.1} parent=1 // pred_check_branch
      %205 = sbr.rel (%p203) target = $region25
    $region24: #{_gptj_mlp_call.1} parent=1 // pred_region
      %v206 = vld [vmem:[%s4] sm:$0x1]
      %v208 = vlaneseq
      %v209 = vshrl.u32 %v208, 7
      %v210 = vsub.s32 0, %v209
      %v211 = vrot.slane %v206, %v210
      %v213 = vadd.f32 %v199, %v211
      %214 = vst.msk [vmem:[#allocation2] sm:$0xff] %vm33, %v213
    $region25: #{_gptj_mlp_call.1} parent=1 // pred_fallthru
      _
    %p215 = scmp.gt.s32.totalorder 0, 0
    // Predicated region
    $region26: #{_gptj_mlp_call.1} parent=1 // pred_check
      %p216 = pneg %p215
    $region27: #{_gptj_mlp_call.1} parent=1 // pred_check_branch
      %218 = sbr.rel (%p216) target = $region29
    $region28: #{_gptj_mlp_call.1} parent=1 // pred_region
      %v219 = vld [vmem:[#allocation2] sm:$0xff]
      %v220 = vadd.f32 %v219, %v199
      %221 = vst.msk [vmem:[#allocation2] sm:$0xff] %vm33, %v220
    $region29: #{_gptj_mlp_call.1} parent=1 // pred_fallthru
      _
    // Predicated region
    $region30: #{_gptj_mlp_call.1} parent=1 // pred_check
      %p222 = pneg %p202
    $region31: #{_gptj_mlp_call.1} parent=1 // pred_check_branch
      %224 = sbr.rel (%p222) target = $region33
    $region32: #{_gptj_mlp_call.1} parent=1 // pred_region
      %v225 = vld [vmem:[#allocation2] sm:$0xff]
      %226 = vst.msk [vmem:[#allocation3] sm:$0xff] %vm33, %v225
    $region33: #{_gptj_mlp_call.1} parent=1 // pred_fallthru
      _
    // Predicated region
    $region34: #{_gptj_mlp_call.1} parent=1 // pred_check
      _
    $region35: #{_gptj_mlp_call.1} parent=1 // pred_check_branch
      %228 = sbr.rel (0) target = $region37
    $region36: #{_gptj_mlp_call.1} parent=1 // pred_region
      %s230 = ssub.s32 128, 128
      %231 = vsyncadd [#allocation4], %s230
      %s233 = sshll.u32 [#allocation3], 4
      %s234 = int_to_ptr.vmem [resolvable:$true] %s233
      %236 = dma.vmem_to_hbm [thread:$0]  %s234, 128, %s5, [#allocation4]
    $region37: #{_gptj_mlp_call.1} parent=1 // pred_fallthru
      _
    // Predicated region
    $region38: #{_gptj_mlp_call.1} parent=1 // pred_check
      _
    $region39: #{_gptj_mlp_call.1} parent=1 // pred_check_branch
      %238 = sbr.rel (0) target = $region41
    $region40: #{_gptj_mlp_call.1} parent=1 // pred_region
      %239 = dma.done [#allocation4], 128
    $region41: #{_gptj_mlp_call.1} parent=1 // pred_fallthru
      _
    %240 = vsyncpa [#allocation4], 1

</llo_original>
